<compile_context>
chip_gen: v7x
topology: tpu7x:2x2x1
jax: 0.10.0
libtpu: 0.0.40
codegen_flags: <defaults>
</compile_context>

<pallas_src>
import functools

import jax
import jax.numpy as jnp
from jax.experimental import pallas as pl
from jax.experimental.pallas import tpu as pltpu

IN_DIM = 3
HID = 64
OUT_DIM = 3
LANE = 128  # lane tile used to pad the tiny layer-3 weight


def _round_up(n, m):
    return ((n + m - 1) // m) * m


def mlp_kernel(x_ref, w1t_ref, b1_ref, w2t_ref, b2_ref, w3p_ref, b3_ref, o_ref):
    # x_ref  : (bm, 3)    f32   batch-major, same layout as the caller's x
    # w1t_ref: (3, 64)    f32   (in, out)
    # b1_ref : (1, 64)    f32
    # w2t_ref: (64, 64)   bf16  (in, out)
    # b2_ref : (1, 64)    f32
    # w3p_ref: (64, 128)  bf16  (in, out), zero-padded to a full lane tile
    # b3_ref : (1, 3)     f32
    # o_ref  : (bm, 3)    f32
    x = x_ref[...]
    w1t = w1t_ref[...]

    # Layer 1 (K=3) on the VPU: three broadcast FMAs; an MXU matmul with K=3
    # would be >95% idle and f32 MXU is emulated anyway.
    h = (b1_ref[...]
         + x[:, 0:1] * w1t[0:1, :]
         + x[:, 1:2] * w1t[1:2, :]
         + x[:, 2:3] * w1t[2:3, :])                       # (bm, 64) f32
    h = jnp.maximum(h, 0.0)

    # Layer 2 (64x64): the only real matmul -> MXU, bf16 operands, f32 accum.
    h = jnp.dot(h.astype(jnp.bfloat16), w2t_ref[...],
                preferred_element_type=jnp.float32) + b2_ref[...]
    h = jnp.maximum(h, 0.0)                               # (bm, 64) f32

    # Layer 3 (N=3): reuse the otherwise-idle MXU with a lane-padded rhs, then
    # slice the 3 real columns (no sublane concatenate / relayout).
    y = jnp.dot(h.astype(jnp.bfloat16), w3p_ref[...],
                preferred_element_type=jnp.float32)       # (bm, 128) f32
    o_ref[...] = (y[:, :OUT_DIM] + b3_ref[...]).astype(o_ref.dtype)


@functools.partial(jax.jit, static_argnames=("bm",))
def inverse_kinematics_forward(x, params, *, bm=4096):
    """x: (B, 3) float32 -> (B, 3) float32 (same semantics as the nn.Module)."""
    B = x.shape[0]
    x = x.astype(jnp.float32)

    # Large, lane-aligned batch tile, auto-scaled with B.  No wrapper-side
    # pad / transpose: Pallas masks the ragged last block on read and write.
    bm_eff = min(_round_up(max(int(bm), 128), 128), _round_up(B, 128))
    if B > 128:
        # Keep >= 2 grid steps so the "parallel" batch axis can be sharded
        # across both TensorCores on v7x (negligible cost on 1-TC v5e/v6e).
        bm_eff = min(bm_eff, _round_up((B + 1) // 2, 128))
    grid = (pl.cdiv(B, bm_eff),)

    # One-time (tiny) weight packing: bf16 for the MXU layers; layer-3 weight
    # zero-padded to a full 128-lane tile.
    w2t_bf16 = params["w2t"].astype(jnp.bfloat16)
    w3p = jnp.zeros((HID, LANE), jnp.bfloat16).at[:, :OUT_DIM].set(
        params["w3"].astype(jnp.bfloat16))

    param_bytes = (IN_DIM * HID + HID + HID * HID + HID + HID * LANE + OUT_DIM) * 4
    cost = pl.CostEstimate(
        flops=2 * B * (IN_DIM * HID + HID * HID + HID * OUT_DIM),
        transcendentals=0,
        bytes_accessed=B * (IN_DIM + OUT_DIM) * 4 + param_bytes,
    )

    return pl.pallas_call(
        mlp_kernel,
        out_shape=jax.ShapeDtypeStruct((B, OUT_DIM), jnp.float32),
        grid_spec=pltpu.PrefetchScalarGridSpec(
            num_scalar_prefetch=0,
            grid=grid,
            in_specs=[
                pl.BlockSpec((bm_eff, IN_DIM), lambda i: (i, 0)),   # x tile
                pl.BlockSpec((IN_DIM, HID), lambda i: (0, 0)),      # w1t (resident)
                pl.BlockSpec((1, HID), lambda i: (0, 0)),           # b1
                pl.BlockSpec((HID, HID), lambda i: (0, 0)),         # w2t (bf16)
                pl.BlockSpec((1, HID), lambda i: (0, 0)),           # b2
                pl.BlockSpec((HID, LANE), lambda i: (0, 0)),        # w3 (padded bf16)
                pl.BlockSpec((1, OUT_DIM), lambda i: (0, 0)),       # b3
            ],
            out_specs=pl.BlockSpec((bm_eff, OUT_DIM), lambda i: (i, 0)),
        ),
        compiler_params=pltpu.CompilerParams(
            dimension_semantics=("parallel",),
            # The narrow (bm, 3) blocks are lane-padded in VMEM; 32 MiB gives
            # comfortable headroom at bm=4096 on every generation (v7x has
            # 64 MiB physical per TensorCore).
            vmem_limit_bytes=32 * 1024 * 1024,
        ),
        cost_estimate=cost,
    )(x, params["w1t"], params["b1"], w2t_bf16, params["b2"], w3p, params["b3"])


def init_params(key):
    """Deterministic PyTorch-style init.  Stored layouts ((in, out)):
       w1t: (3, 64)   b1: (1, 64)
       w2t: (64, 64)  b2: (1, 64)
       w3 : (64, 3)   b3: (1, 3)
    """
    ks = jax.random.split(key, 6)

    def uni(k, shape, fan_in):
        bound = 1.0 / (float(fan_in) ** 0.5)
        return jax.random.uniform(k, shape, jnp.float32, -bound, bound)

    return {
        "w1t": uni(ks[0], (HID, IN_DIM), IN_DIM).T,
        "b1": uni(ks[1], (1, HID), IN_DIM),
        "w2t": uni(ks[2], (HID, HID), HID).T,
        "b2": uni(ks[3], (1, HID), HID),
        "w3": uni(ks[4], (OUT_DIM, HID), HID).T,
        "b3": uni(ks[5], (1, OUT_DIM), HID),
    }


def reference_forward(x, p):
    h = jnp.maximum(x @ p["w1t"] + p["b1"], 0.0)
    h = jnp.maximum(h @ p["w2t"] + p["b2"], 0.0)
    return h @ p["w3"] + p["b3"]


if __name__ == "__main__":
    key = jax.random.PRNGKey(0)
    k_params, k_x = jax.random.split(key)
    params = init_params(k_params)

    # bf16 operands on the 64x64 / 64x3 matmuls (f32 accumulation) => use a
    # looser tolerance than the pure-f32 version.
    TOL = dict(atol=2e-2, rtol=2e-2)

    # Small case (B=8): single partial 128-row tile; tail writes are masked.
    B = 8
    x = jax.random.normal(k_x, (B, IN_DIM), jnp.float32)
    out = jax.block_until_ready(inverse_kinematics_forward(x, params))
    ref = reference_forward(x, params)
    assert out.shape == (B, OUT_DIM)
    assert jnp.allclose(out, ref, **TOL), "mismatch vs reference (B=8)"

    # Ragged batch: multi-step parallel grid with a partial last block.
    B2 = 300
    x2 = jax.random.normal(jax.random.PRNGKey(1), (B2, IN_DIM), jnp.float32)
    out2 = jax.block_until_ready(inverse_kinematics_forward(x2, params))
    ref2 = reference_forward(x2, params)
    assert out2.shape == (B2, OUT_DIM)
    assert jnp.allclose(out2, ref2, **TOL), "mismatch vs reference (B=300)"

    print("KERNEL_OK")
</pallas_src>

<mosaic_0001>
module attributes {stable_mosaic.version = 11 : i64} {
  func.func @mlp_kernel(%arg0: i32, %arg1: memref<128x3xf32, #tpu.memory_space<vmem>>, %arg2: memref<3x64xf32, #tpu.memory_space<vmem>>, %arg3: memref<1x64xf32, #tpu.memory_space<vmem>>, %arg4: memref<64x64xbf16, #tpu.memory_space<vmem>>, %arg5: memref<1x64xf32, #tpu.memory_space<vmem>>, %arg6: memref<64x128xbf16, #tpu.memory_space<vmem>>, %arg7: memref<1x3xf32, #tpu.memory_space<vmem>>, %arg8: memref<128x3xf32, #tpu.memory_space<vmem>>) attributes {dimension_semantics = [#tpu.dimension_semantics<parallel>], iteration_bounds = array<i64: 1>, scalar_prefetch = 0 : i64, scratch_operands = 0 : i64, tpu.core_type = #tpu.core_type<tc>, window_params = [{transform_indices = @transform_0, window_bounds = array<i64: 128, 3>}, {pipeline_mode = #tpu.pipeline_mode<synchronous>, transform_indices = @transform_1, window_bounds = array<i64: 3, 64>}, {pipeline_mode = #tpu.pipeline_mode<synchronous>, transform_indices = @transform_2, window_bounds = array<i64: 1, 64>}, {pipeline_mode = #tpu.pipeline_mode<synchronous>, transform_indices = @transform_3, window_bounds = array<i64: 64, 64>}, {pipeline_mode = #tpu.pipeline_mode<synchronous>, transform_indices = @transform_4, window_bounds = array<i64: 1, 64>}, {pipeline_mode = #tpu.pipeline_mode<synchronous>, transform_indices = @transform_5, window_bounds = array<i64: 64, 128>}, {pipeline_mode = #tpu.pipeline_mode<synchronous>, transform_indices = @transform_6, window_bounds = array<i64: 1, 3>}, {transform_indices = @transform_7, window_bounds = array<i64: 128, 3>}]} {
    %c0 = arith.constant 0 : index
    %c0_0 = arith.constant 0 : index
    %0 = vector.load %arg1[%c0, %c0_0] : memref<128x3xf32, #tpu.memory_space<vmem>>, vector<128x3xf32>
    %c0_1 = arith.constant 0 : index
    %c0_2 = arith.constant 0 : index
    %1 = vector.load %arg2[%c0_1, %c0_2] : memref<3x64xf32, #tpu.memory_space<vmem>>, vector<3x64xf32>
    %c0_3 = arith.constant 0 : index
    %c0_4 = arith.constant 0 : index
    %2 = vector.load %arg3[%c0_3, %c0_4] : memref<1x64xf32, #tpu.memory_space<vmem>>, vector<1x64xf32>
    %3 = vector.extract_strided_slice %0 {offsets = [0, 0], sizes = [128, 1], strides = [1, 1]} : vector<128x3xf32> to vector<128x1xf32>
    %4 = vector.extract_strided_slice %1 {offsets = [0, 0], sizes = [1, 64], strides = [1, 1]} : vector<3x64xf32> to vector<1x64xf32>
    %5 = vector.broadcast %3 : vector<128x1xf32> to vector<128x64xf32>
    %6 = vector.broadcast %4 : vector<1x64xf32> to vector<128x64xf32>
    %7 = arith.mulf %5, %6 : vector<128x64xf32>
    %8 = vector.broadcast %2 : vector<1x64xf32> to vector<128x64xf32>
    %9 = arith.addf %8, %7 : vector<128x64xf32>
    %10 = vector.extract_strided_slice %0 {offsets = [0, 1], sizes = [128, 1], strides = [1, 1]} : vector<128x3xf32> to vector<128x1xf32>
    %11 = vector.extract_strided_slice %1 {offsets = [1, 0], sizes = [1, 64], strides = [1, 1]} : vector<3x64xf32> to vector<1x64xf32>
    %12 = vector.broadcast %10 : vector<128x1xf32> to vector<128x64xf32>
    %13 = vector.broadcast %11 : vector<1x64xf32> to vector<128x64xf32>
    %14 = arith.mulf %12, %13 : vector<128x64xf32>
    %15 = arith.addf %9, %14 : vector<128x64xf32>
    %16 = vector.extract_strided_slice %0 {offsets = [0, 2], sizes = [128, 1], strides = [1, 1]} : vector<128x3xf32> to vector<128x1xf32>
    %17 = vector.extract_strided_slice %1 {offsets = [2, 0], sizes = [1, 64], strides = [1, 1]} : vector<3x64xf32> to vector<1x64xf32>
    %18 = vector.broadcast %16 : vector<128x1xf32> to vector<128x64xf32>
    %19 = vector.broadcast %17 : vector<1x64xf32> to vector<128x64xf32>
    %20 = arith.mulf %18, %19 : vector<128x64xf32>
    %21 = arith.addf %15, %20 : vector<128x64xf32>
    %cst = arith.constant 0.000000e+00 : f32
    %22 = vector.broadcast %cst : f32 to vector<128x64xf32>
    %23 = arith.maximumf %21, %22 : vector<128x64xf32>
    %24 = arith.truncf %23 : vector<128x64xf32> to vector<128x64xbf16>
    %c0_5 = arith.constant 0 : index
    %c0_6 = arith.constant 0 : index
    %25 = vector.load %arg4[%c0_5, %c0_6] : memref<64x64xbf16, #tpu.memory_space<vmem>>, vector<64x64xbf16>
    %cst_7 = arith.constant dense<0.000000e+00> : vector<128x64xf32>
    %26 = tpu.matmul %24, %25, %cst_7 {dimension_numbers = #tpu.dot_dimension_numbers<[1], [0], [0], [1], [0, 0, 1, 1], [], []>} : vector<128x64xbf16>, vector<64x64xbf16>, vector<128x64xf32> -> vector<128x64xf32>
    %c0_8 = arith.constant 0 : index
    %c0_9 = arith.constant 0 : index
    %27 = vector.load %arg5[%c0_8, %c0_9] : memref<1x64xf32, #tpu.memory_space<vmem>>, vector<1x64xf32>
    %28 = vector.broadcast %27 : vector<1x64xf32> to vector<128x64xf32>
    %29 = arith.addf %26, %28 : vector<128x64xf32>
    %cst_10 = arith.constant 0.000000e+00 : f32
    %30 = vector.broadcast %cst_10 : f32 to vector<128x64xf32>
    %31 = arith.maximumf %29, %30 : vector<128x64xf32>
    %32 = arith.truncf %31 : vector<128x64xf32> to vector<128x64xbf16>
    %c0_11 = arith.constant 0 : index
    %c0_12 = arith.constant 0 : index
    %33 = vector.load %arg6[%c0_11, %c0_12] : memref<64x128xbf16, #tpu.memory_space<vmem>>, vector<64x128xbf16>
    %cst_13 = arith.constant dense<0.000000e+00> : vector<128x128xf32>
    %34 = tpu.matmul %32, %33, %cst_13 {dimension_numbers = #tpu.dot_dimension_numbers<[1], [0], [0], [1], [0, 0, 1, 1], [], []>} : vector<128x64xbf16>, vector<64x128xbf16>, vector<128x128xf32> -> vector<128x128xf32>
    %35 = vector.extract_strided_slice %34 {offsets = [0, 0], sizes = [128, 3], strides = [1, 1]} : vector<128x128xf32> to vector<128x3xf32>
    %c0_14 = arith.constant 0 : index
    %c0_15 = arith.constant 0 : index
    %36 = vector.load %arg7[%c0_14, %c0_15] : memref<1x3xf32, #tpu.memory_space<vmem>>, vector<1x3xf32>
    %37 = vector.broadcast %36 : vector<1x3xf32> to vector<128x3xf32>
    %38 = arith.addf %35, %37 : vector<128x3xf32>
    %c0_16 = arith.constant 0 : index
    %c0_17 = arith.constant 0 : index
    %39 = vector.load %arg8[%c0_16, %c0_17] : memref<128x3xf32, #tpu.memory_space<vmem>>, vector<128x3xf32>
    tpu.vector_store %arg8[%c0_16, %c0_17], %38 {strides = array<i32>} : memref<128x3xf32, #tpu.memory_space<vmem>>, vector<128x3xf32>,
    return
  }
  func.func @transform_0(%arg0: i32) -> (i32, i32) {
    %c0_i32 = arith.constant 0 : i32
    %c0_i32_0 = arith.constant 0 : i32
    return %arg0, %c0_i32 : i32, i32
  }
  func.func @transform_1(%arg0: i32) -> (i32, i32) {
    %c0_i32 = arith.constant 0 : i32
    %c0_i32_0 = arith.constant 0 : i32
    %c0_i32_1 = arith.constant 0 : i32
    return %c0_i32, %c0_i32_0 : i32, i32
  }
  func.func @transform_2(%arg0: i32) -> (i32, i32) {
    %c0_i32 = arith.constant 0 : i32
    %c0_i32_0 = arith.constant 0 : i32
    %c0_i32_1 = arith.constant 0 : i32
    return %c0_i32, %c0_i32_0 : i32, i32
  }
  func.func @transform_3(%arg0: i32) -> (i32, i32) {
    %c0_i32 = arith.constant 0 : i32
    %c0_i32_0 = arith.constant 0 : i32
    %c0_i32_1 = arith.constant 0 : i32
    return %c0_i32, %c0_i32_0 : i32, i32
  }
  func.func @transform_4(%arg0: i32) -> (i32, i32) {
    %c0_i32 = arith.constant 0 : i32
    %c0_i32_0 = arith.constant 0 : i32
    %c0_i32_1 = arith.constant 0 : i32
    return %c0_i32, %c0_i32_0 : i32, i32
  }
  func.func @transform_5(%arg0: i32) -> (i32, i32) {
    %c0_i32 = arith.constant 0 : i32
    %c0_i32_0 = arith.constant 0 : i32
    %c0_i32_1 = arith.constant 0 : i32
    return %c0_i32, %c0_i32_0 : i32, i32
  }
  func.func @transform_6(%arg0: i32) -> (i32, i32) {
    %c0_i32 = arith.constant 0 : i32
    %c0_i32_0 = arith.constant 0 : i32
    %c0_i32_1 = arith.constant 0 : i32
    return %c0_i32, %c0_i32_0 : i32, i32
  }
  func.func @transform_7(%arg0: i32) -> (i32, i32) {
    %c0_i32 = arith.constant 0 : i32
    %c0_i32_0 = arith.constant 0 : i32
    return %arg0, %c0_i32 : i32, i32
  }
}

</mosaic_0001>

<llo_original>
// kernel: inverse_kinematics_forward.1
$region0: #{inverse_kinematics_forward.1}
  #allocation0 [shape = 'u32[]', space=smem, size = 0x4, offset = 0x4, fixed_abs, tag = 'smem constant byte address 0x4 - core index']
  #allocation1 [shape = 'u32[144,128]{1,0:T(1,128)}', space=vmem, size = 0x12000, scoped, tag = 'internal scratch']
  %s0 = inlined_call_operand.vmem [shape: f32[8,3], index: 0, kind: input, shape index: {}]
  %s1 = inlined_call_operand.vmem [shape: f32[3,64], index: 1, kind: input, shape index: {}]
  %s2 = inlined_call_operand.vmem [shape: f32[1,64], index: 2, kind: input, shape index: {}]
  %s3 = inlined_call_operand.vmem [shape: bf16[64,64], index: 3, kind: input, shape index: {}]
  %s4 = inlined_call_operand.vmem [shape: f32[1,64], index: 4, kind: input, shape index: {}]
  %s5 = inlined_call_operand.vmem [shape: bf16[64,128], index: 5, kind: input, shape index: {}]
  %s6 = inlined_call_operand.vmem [shape: f32[1,3], index: 6, kind: input, shape index: {}]
  %s7 = inlined_call_operand.vmem [shape: f32[8,3], index: 7, kind: output, shape index: {}]
  %s8 = sld [smem:[#allocation0]]
  $region72: #{inverse_kinematics_forward.1} parent=0
    _
  %s10 = ssub.s32 1, %s8
  %s11 = scalar_select 0, %s10, %s8
  $region1: #{inverse_kinematics_forward.1} parent=0
    #allocation2 [shape = 'u8[65536]{0}', space=vmem, size = 0x10000, scoped, tag = 'output window, operand 0, single buffered']
    // Predicated region
    $region2: #{inverse_kinematics_forward.1} parent=1 // pred_check
      _
    $region3: #{inverse_kinematics_forward.1} parent=1 // pred_check_branch
      %13 = sbr.rel (0) target = $region5
    $region4: #{inverse_kinematics_forward.1} parent=1 // pred_region
      _
    $region5: #{inverse_kinematics_forward.1} parent=1 // pred_fallthru
      _
    // Predicated region
    $region6: #{inverse_kinematics_forward.1} parent=1 // pred_check
      _
    $region7: #{inverse_kinematics_forward.1} parent=1 // pred_check_branch
      %15 = sbr.rel (0) target = $region9
    $region8: #{inverse_kinematics_forward.1} parent=1 // pred_region
      _
    $region9: #{inverse_kinematics_forward.1} parent=1 // pred_fallthru
      _
    // Predicated region
    $region10: #{inverse_kinematics_forward.1} parent=1 // pred_check
      _
    $region11: #{inverse_kinematics_forward.1} parent=1 // pred_check_branch
      %17 = sbr.rel (0) target = $region13
    $region12: #{inverse_kinematics_forward.1} parent=1 // pred_region
      _
    $region13: #{inverse_kinematics_forward.1} parent=1 // pred_fallthru
      _
    // Predicated region
    $region14: #{inverse_kinematics_forward.1} parent=1 // pred_check
      _
    $region15: #{inverse_kinematics_forward.1} parent=1 // pred_check_branch
      %19 = sbr.rel (0) target = $region17
    $region16: #{inverse_kinematics_forward.1} parent=1 // pred_region
      _
    $region17: #{inverse_kinematics_forward.1} parent=1 // pred_fallthru
      _
    // Predicated region
    $region18: #{inverse_kinematics_forward.1} parent=1 // pred_check
      _
    $region19: #{inverse_kinematics_forward.1} parent=1 // pred_check_branch
      %21 = sbr.rel (0) target = $region21
    $region20: #{inverse_kinematics_forward.1} parent=1 // pred_region
      _
    $region21: #{inverse_kinematics_forward.1} parent=1 // pred_fallthru
      _
    // Predicated region
    $region22: #{inverse_kinematics_forward.1} parent=1 // pred_check
      _
    $region23: #{inverse_kinematics_forward.1} parent=1 // pred_check_branch
      %23 = sbr.rel (0) target = $region25
    $region24: #{inverse_kinematics_forward.1} parent=1 // pred_region
      _
    $region25: #{inverse_kinematics_forward.1} parent=1 // pred_fallthru
      _
    // Predicated region
    $region26: #{inverse_kinematics_forward.1} parent=1 // pred_check
      _
    $region27: #{inverse_kinematics_forward.1} parent=1 // pred_check_branch
      %25 = sbr.rel (0) target = $region29
    $region28: #{inverse_kinematics_forward.1} parent=1 // pred_region
      _
    $region29: #{inverse_kinematics_forward.1} parent=1 // pred_fallthru
      _
    %v27 = vld [vmem:[%s0] sm:$0xff]
    %v28 = vld [vmem:[%s0 + $0x8] sm:$0xff]
    %v29 = vld [vmem:[%s0 + $0x10] sm:$0xff]
    %v30 = vld [vmem:[%s0 + $0x18] sm:$0xff]
    %v31 = vld [vmem:[%s0 + $0x20] sm:$0xff]
    %v32 = vld [vmem:[%s0 + $0x28] sm:$0xff]
    %v33 = vld [vmem:[%s0 + $0x30] sm:$0xff]
    %v34 = vld [vmem:[%s0 + $0x38] sm:$0xff]
    %v35 = vld [vmem:[%s0 + $0x40] sm:$0xff]
    %v36 = vld [vmem:[%s0 + $0x48] sm:$0xff]
    %v37 = vld [vmem:[%s0 + $0x50] sm:$0xff]
    %v38 = vld [vmem:[%s0 + $0x58] sm:$0xff]
    %v39 = vld [vmem:[%s0 + $0x60] sm:$0xff]
    %v40 = vld [vmem:[%s0 + $0x68] sm:$0xff]
    %v41 = vld [vmem:[%s0 + $0x70] sm:$0xff]
    %v42 = vld [vmem:[%s0 + $0x78] sm:$0xff]
    %v43 = vld [vmem:[%s1] sm:$0x7]
    %v44 = vld [vmem:[%s2] sm:$0x1]
    %46 = vset.pattern.permute.xlu0 0
    %47 = vperm.xlu0 %46, %v27
    %v48 = vpop.permute.xlu0 %47
    %51 = vset.pattern.permute.xlu0 0
    %52 = vperm.xlu0 %51, %v28
    %v53 = vpop.permute.xlu0 %52
    %56 = vset.pattern.permute.xlu0 0
    %57 = vperm.xlu0 %56, %v29
    %v58 = vpop.permute.xlu0 %57
    %61 = vset.pattern.permute.xlu0 0
    %62 = vperm.xlu0 %61, %v30
    %v63 = vpop.permute.xlu0 %62
    %66 = vset.pattern.permute.xlu0 0
    %67 = vperm.xlu0 %66, %v31
    %v68 = vpop.permute.xlu0 %67
    %71 = vset.pattern.permute.xlu0 0
    %72 = vperm.xlu0 %71, %v32
    %v73 = vpop.permute.xlu0 %72
    %76 = vset.pattern.permute.xlu0 0
    %77 = vperm.xlu0 %76, %v33
    %v78 = vpop.permute.xlu0 %77
    %81 = vset.pattern.permute.xlu0 0
    %82 = vperm.xlu0 %81, %v34
    %v83 = vpop.permute.xlu0 %82
    %86 = vset.pattern.permute.xlu0 0
    %87 = vperm.xlu0 %86, %v35
    %v88 = vpop.permute.xlu0 %87
    %91 = vset.pattern.permute.xlu0 0
    %92 = vperm.xlu0 %91, %v36
    %v93 = vpop.permute.xlu0 %92
    %96 = vset.pattern.permute.xlu0 0
    %97 = vperm.xlu0 %96, %v37
    %v98 = vpop.permute.xlu0 %97
    %101 = vset.pattern.permute.xlu0 0
    %102 = vperm.xlu0 %101, %v38
    %v103 = vpop.permute.xlu0 %102
    %106 = vset.pattern.permute.xlu0 0
    %107 = vperm.xlu0 %106, %v39
    %v108 = vpop.permute.xlu0 %107
    %111 = vset.pattern.permute.xlu0 0
    %112 = vperm.xlu0 %111, %v40
    %v113 = vpop.permute.xlu0 %112
    %116 = vset.pattern.permute.xlu0 0
    %117 = vperm.xlu0 %116, %v41
    %v118 = vpop.permute.xlu0 %117
    %121 = vset.pattern.permute.xlu0 0
    %122 = vperm.xlu0 %121, %v42
    %v123 = vpop.permute.xlu0 %122
    %v125 = vlaneseq
    %v126 = vshrl.u32 %v125, 7
    %v127 = vsub.s32 0, %v126
    %v128 = vrot.slane %v43, %v127
    %v129 = vmul.f32 %v48, %v128
    %v130 = vmul.f32 %v53, %v128
    %v131 = vmul.f32 %v58, %v128
    %v132 = vmul.f32 %v63, %v128
    %v133 = vmul.f32 %v68, %v128
    %v134 = vmul.f32 %v73, %v128
    %v135 = vmul.f32 %v78, %v128
    %v136 = vmul.f32 %v83, %v128
    %v137 = vmul.f32 %v88, %v128
    %v138 = vmul.f32 %v93, %v128
    %v139 = vmul.f32 %v98, %v128
    %v140 = vmul.f32 %v103, %v128
    %v141 = vmul.f32 %v108, %v128
    %v142 = vmul.f32 %v113, %v128
    %v143 = vmul.f32 %v118, %v128
    %v144 = vmul.f32 %v123, %v128
    %v146 = vlaneseq
    %v147 = vshrl.u32 %v146, 7
    %v148 = vsub.s32 0, %v147
    %v149 = vrot.slane %v44, %v148
    %v151 = vadd.f32 %v149, %v129
    %v152 = vadd.f32 %v149, %v130
    %v153 = vadd.f32 %v149, %v131
    %v154 = vadd.f32 %v149, %v132
    %v155 = vadd.f32 %v149, %v133
    %v156 = vadd.f32 %v149, %v134
    %v157 = vadd.f32 %v149, %v135
    %v158 = vadd.f32 %v149, %v136
    %v159 = vadd.f32 %v149, %v137
    %v160 = vadd.f32 %v149, %v138
    %v161 = vadd.f32 %v149, %v139
    %v162 = vadd.f32 %v149, %v140
    %v163 = vadd.f32 %v149, %v141
    %v164 = vadd.f32 %v149, %v142
    %v165 = vadd.f32 %v149, %v143
    %v166 = vadd.f32 %v149, %v144
    %167 = vset.pattern.permute.xlu0 1
    %168 = vperm.xlu0 %167, %v27
    %v169 = vpop.permute.xlu0 %168
    %171 = vset.pattern.permute.xlu0 1
    %172 = vperm.xlu0 %171, %v28
    %v173 = vpop.permute.xlu0 %172
    %175 = vset.pattern.permute.xlu0 1
    %176 = vperm.xlu0 %175, %v29
    %v177 = vpop.permute.xlu0 %176
    %179 = vset.pattern.permute.xlu0 1
    %180 = vperm.xlu0 %179, %v30
    %v181 = vpop.permute.xlu0 %180
    %183 = vset.pattern.permute.xlu0 1
    %184 = vperm.xlu0 %183, %v31
    %v185 = vpop.permute.xlu0 %184
    %187 = vset.pattern.permute.xlu0 1
    %188 = vperm.xlu0 %187, %v32
    %v189 = vpop.permute.xlu0 %188
    %191 = vset.pattern.permute.xlu0 1
    %192 = vperm.xlu0 %191, %v33
    %v193 = vpop.permute.xlu0 %192
    %195 = vset.pattern.permute.xlu0 1
    %196 = vperm.xlu0 %195, %v34
    %v197 = vpop.permute.xlu0 %196
    %199 = vset.pattern.permute.xlu0 1
    %200 = vperm.xlu0 %199, %v35
    %v201 = vpop.permute.xlu0 %200
    %203 = vset.pattern.permute.xlu0 1
    %204 = vperm.xlu0 %203, %v36
    %v205 = vpop.permute.xlu0 %204
    %207 = vset.pattern.permute.xlu0 1
    %208 = vperm.xlu0 %207, %v37
    %v209 = vpop.permute.xlu0 %208
    %211 = vset.pattern.permute.xlu0 1
    %212 = vperm.xlu0 %211, %v38
    %v213 = vpop.permute.xlu0 %212
    %215 = vset.pattern.permute.xlu0 1
    %216 = vperm.xlu0 %215, %v39
    %v217 = vpop.permute.xlu0 %216
    %219 = vset.pattern.permute.xlu0 1
    %220 = vperm.xlu0 %219, %v40
    %v221 = vpop.permute.xlu0 %220
    %223 = vset.pattern.permute.xlu0 1
    %224 = vperm.xlu0 %223, %v41
    %v225 = vpop.permute.xlu0 %224
    %227 = vset.pattern.permute.xlu0 1
    %228 = vperm.xlu0 %227, %v42
    %v229 = vpop.permute.xlu0 %228
    %v231 = vlaneseq
    %v232 = vshrl.u32 %v231, 7
    %v233 = vsub.s32 1, %v232
    %v234 = vrot.slane %v43, %v233
    %v235 = vmul.f32 %v169, %v234
    %v236 = vmul.f32 %v173, %v234
    %v237 = vmul.f32 %v177, %v234
    %v238 = vmul.f32 %v181, %v234
    %v239 = vmul.f32 %v185, %v234
    %v240 = vmul.f32 %v189, %v234
    %v241 = vmul.f32 %v193, %v234
    %v242 = vmul.f32 %v197, %v234
    %v243 = vmul.f32 %v201, %v234
    %v244 = vmul.f32 %v205, %v234
    %v245 = vmul.f32 %v209, %v234
    %v246 = vmul.f32 %v213, %v234
    %v247 = vmul.f32 %v217, %v234
    %v248 = vmul.f32 %v221, %v234
    %v249 = vmul.f32 %v225, %v234
    %v250 = vmul.f32 %v229, %v234
    %v251 = vadd.f32 %v151, %v235
    %v252 = vadd.f32 %v152, %v236
    %v253 = vadd.f32 %v153, %v237
    %v254 = vadd.f32 %v154, %v238
    %v255 = vadd.f32 %v155, %v239
    %v256 = vadd.f32 %v156, %v240
    %v257 = vadd.f32 %v157, %v241
    %v258 = vadd.f32 %v158, %v242
    %v259 = vadd.f32 %v159, %v243
    %v260 = vadd.f32 %v160, %v244
    %v261 = vadd.f32 %v161, %v245
    %v262 = vadd.f32 %v162, %v246
    %v263 = vadd.f32 %v163, %v247
    %v264 = vadd.f32 %v164, %v248
    %v265 = vadd.f32 %v165, %v249
    %v266 = vadd.f32 %v166, %v250
    %267 = vset.pattern.permute.xlu0 2
    %268 = vperm.xlu0 %267, %v27
    %v269 = vpop.permute.xlu0 %268
    %271 = vset.pattern.permute.xlu0 2
    %272 = vperm.xlu0 %271, %v28
    %v273 = vpop.permute.xlu0 %272
    %275 = vset.pattern.permute.xlu0 2
    %276 = vperm.xlu0 %275, %v29
    %v277 = vpop.permute.xlu0 %276
    %279 = vset.pattern.permute.xlu0 2
    %280 = vperm.xlu0 %279, %v30
    %v281 = vpop.permute.xlu0 %280
    %283 = vset.pattern.permute.xlu0 2
    %284 = vperm.xlu0 %283, %v31
    %v285 = vpop.permute.xlu0 %284
    %287 = vset.pattern.permute.xlu0 2
    %288 = vperm.xlu0 %287, %v32
    %v289 = vpop.permute.xlu0 %288
    %291 = vset.pattern.permute.xlu0 2
    %292 = vperm.xlu0 %291, %v33
    %v293 = vpop.permute.xlu0 %292
    %295 = vset.pattern.permute.xlu0 2
    %296 = vperm.xlu0 %295, %v34
    %v297 = vpop.permute.xlu0 %296
    %299 = vset.pattern.permute.xlu0 2
    %300 = vperm.xlu0 %299, %v35
    %v301 = vpop.permute.xlu0 %300
    %303 = vset.pattern.permute.xlu0 2
    %304 = vperm.xlu0 %303, %v36
    %v305 = vpop.permute.xlu0 %304
    %307 = vset.pattern.permute.xlu0 2
    %308 = vperm.xlu0 %307, %v37
    %v309 = vpop.permute.xlu0 %308
    %311 = vset.pattern.permute.xlu0 2
    %312 = vperm.xlu0 %311, %v38
    %v313 = vpop.permute.xlu0 %312
    %315 = vset.pattern.permute.xlu0 2
    %316 = vperm.xlu0 %315, %v39
    %v317 = vpop.permute.xlu0 %316
    %319 = vset.pattern.permute.xlu0 2
    %320 = vperm.xlu0 %319, %v40
    %v321 = vpop.permute.xlu0 %320
    %323 = vset.pattern.permute.xlu0 2
    %324 = vperm.xlu0 %323, %v41
    %v325 = vpop.permute.xlu0 %324
    %327 = vset.pattern.permute.xlu0 2
    %328 = vperm.xlu0 %327, %v42
    %v329 = vpop.permute.xlu0 %328
    %v331 = vlaneseq
    %v332 = vshrl.u32 %v331, 7
    %v333 = vsub.s32 2, %v332
    %v334 = vrot.slane %v43, %v333
    %v335 = vmul.f32 %v269, %v334
    %v336 = vmul.f32 %v273, %v334
    %v337 = vmul.f32 %v277, %v334
    %v338 = vmul.f32 %v281, %v334
    %v339 = vmul.f32 %v285, %v334
    %v340 = vmul.f32 %v289, %v334
    %v341 = vmul.f32 %v293, %v334
    %v342 = vmul.f32 %v297, %v334
    %v343 = vmul.f32 %v301, %v334
    %v344 = vmul.f32 %v305, %v334
    %v345 = vmul.f32 %v309, %v334
    %v346 = vmul.f32 %v313, %v334
    %v347 = vmul.f32 %v317, %v334
    %v348 = vmul.f32 %v321, %v334
    %v349 = vmul.f32 %v325, %v334
    %v350 = vmul.f32 %v329, %v334
    %v351 = vadd.f32 %v251, %v335
    %v352 = vadd.f32 %v252, %v336
    %v353 = vadd.f32 %v253, %v337
    %v354 = vadd.f32 %v254, %v338
    %v355 = vadd.f32 %v255, %v339
    %v356 = vadd.f32 %v256, %v340
    %v357 = vadd.f32 %v257, %v341
    %v358 = vadd.f32 %v258, %v342
    %v359 = vadd.f32 %v259, %v343
    %v360 = vadd.f32 %v260, %v344
    %v361 = vadd.f32 %v261, %v345
    %v362 = vadd.f32 %v262, %v346
    %v363 = vadd.f32 %v263, %v347
    %v364 = vadd.f32 %v264, %v348
    %v365 = vadd.f32 %v265, %v349
    %v366 = vadd.f32 %v266, %v350
    %v367 = vmax.f32 %v351, 0.0
    %v368 = vmax.f32 %v352, 0.0
    %v369 = vmax.f32 %v353, 0.0
    %v370 = vmax.f32 %v354, 0.0
    %v371 = vmax.f32 %v355, 0.0
    %v372 = vmax.f32 %v356, 0.0
    %v373 = vmax.f32 %v357, 0.0
    %v374 = vmax.f32 %v358, 0.0
    %v375 = vmax.f32 %v359, 0.0
    %v376 = vmax.f32 %v360, 0.0
    %v377 = vmax.f32 %v361, 0.0
    %v378 = vmax.f32 %v362, 0.0
    %v379 = vmax.f32 %v363, 0.0
    %v380 = vmax.f32 %v364, 0.0
    %v381 = vmax.f32 %v365, 0.0
    %v382 = vmax.f32 %v366, 0.0
    %v383 = vpack.c.bf16 %v368, %v367
    %v384 = vpack.c.bf16 %v370, %v369
    %v385 = vpack.c.bf16 %v372, %v371
    %v386 = vpack.c.bf16 %v374, %v373
    %v387 = vpack.c.bf16 %v376, %v375
    %v388 = vpack.c.bf16 %v378, %v377
    %v389 = vpack.c.bf16 %v380, %v379
    %v390 = vpack.c.bf16 %v382, %v381
    %v391 = vld [vmem:[%s3] sm:$0xf]
    %v392 = vld [vmem:[%s3 + $0x4] sm:$0xf]
    %v393 = vld [vmem:[%s3 + $0x8] sm:$0xf]
    %v394 = vld [vmem:[%s3 + $0xc] sm:$0xf]
    %v395 = vld [vmem:[%s3 + $0x10] sm:$0xf]
    %v396 = vld [vmem:[%s3 + $0x14] sm:$0xf]
    %v397 = vld [vmem:[%s3 + $0x18] sm:$0xf]
    %v398 = vld [vmem:[%s3 + $0x1c] sm:$0xf]
    %v399 = vld [vmem:[%s4] sm:$0x1]
    %v401 = vlaneseq
    %v402 = vshrl.u32 %v401, 7
    %v403 = vsub.s32 0, %v402
    %v404 = vrot.slane %v399, %v403
    %v414 = vunpack.c.l.b16 %v391
    %v415 = vunpack.c.l.b16 %v392
    %v416 = vunpack.c.l.b16 %v393
    %v417 = vunpack.c.l.b16 %v394
    %v418 = vunpack.c.l.b16 %v395
    %v419 = vunpack.c.l.b16 %v396
    %v420 = vunpack.c.l.b16 %v397
    %v421 = vunpack.c.l.b16 %v398
    %v422 = vpack.c.b16 %v415, %v414
    %v423 = vpack.c.b16 %v417, %v416
    %v424 = vpack.c.b16 %v419, %v418
    %v425 = vpack.c.b16 %v421, %v420
    %vm430 = vcmask 523264
    %v432 = vsel %vm430, %v383, 0
    %v435 = vsel %vm430, %v384, 0
    %v438 = vsel %vm430, %v385, 0
    %v441 = vsel %vm430, %v386, 0
    %v444 = vsel %vm430, %v387, 0
    %v447 = vsel %vm430, %v388, 0
    %v450 = vsel %vm430, %v389, 0
    %v453 = vsel %vm430, %v390, 0
    %455 = vmatprep.subr.bf16.mxu0 0
    %456 = vmatpush1.bf16.msra.mxu0 %v422
    %457 = vmatprep.subr.bf16.mxu0 0
    %458 = vmatpush1.bf16.msra.mxu0 %v423
    %459 = vmatprep.subr.bf16.mxu0 0
    %460 = vmatpush1.bf16.msra.mxu0 %v424
    %461 = vmatprep.subr.bf16.mxu0 0
    %462 = vmatpush1.bf16.msra.mxu0 %v425
    %463 = vmatprep.subr.bf16.mxu0 0
    %464 = vmatpush1.bf16.msra.mxu0 0
    %465 = vmatprep.subr.bf16.mxu0 0
    %466 = vmatpush1.bf16.msra.mxu0 0
    %467 = vmatprep.subr.bf16.mxu0 0
    %468 = vmatpush1.bf16.msra.mxu0 0
    %469 = vmatprep.subr.bf16.mxu0 0
    %470 = vmatpush1.bf16.msra.mxu0 0
    %471 = vmatprep.subr.bf16.mxu0 0
    %472 = vmatpush1.bf16.msra.mxu0 0
    %473 = vmatprep.subr.bf16.mxu0 0
    %474 = vmatpush1.bf16.msra.mxu0 0
    %475 = vmatprep.subr.bf16.mxu0 0
    %476 = vmatpush1.bf16.msra.mxu0 0
    %477 = vmatprep.subr.bf16.mxu0 0
    %478 = vmatpush1.bf16.msra.mxu0 0
    %479 = vmatprep.subr.bf16.mxu0 0
    %480 = vmatpush1.bf16.msra.mxu0 0
    %481 = vmatprep.subr.bf16.mxu0 0
    %482 = vmatpush1.bf16.msra.mxu0 0
    %483 = vmatprep.subr.bf16.mxu0 0
    %484 = vmatpush1.bf16.msra.mxu0 0
    %485 = vmatprep.subr.bf16.mxu0 0
    %486 = vmatpush1.bf16.msra.mxu0 0
    %487 = vmatprep.mubr.bf16.mxu0 0
    %488 = vmatmul.mubr.bf16.gmra.mrb[0].mxu0 %v432
    %v489 = vpop.f32.mrb[0].mxu0
    %v490 = vadd.f32 %v404, %v489
    %v491 = vpop.f32.mrb[0].mxu0
    %v492 = vpop.f32.mrb[0].mxu0
    %v493 = vadd.f32 %v404, %v492
    %v494 = vpop.f32.mrb[0].mxu0
    %495 = vmatprep.mubr.bf16.mxu0 0
    %496 = vmatmul.mubr.bf16.gmra.mrb[0].mxu0 %v435
    %v497 = vpop.f32.mrb[0].mxu0
    %v498 = vadd.f32 %v404, %v497
    %v499 = vpop.f32.mrb[0].mxu0
    %v500 = vpop.f32.mrb[0].mxu0
    %v501 = vadd.f32 %v404, %v500
    %v502 = vpop.f32.mrb[0].mxu0
    %503 = vmatprep.mubr.bf16.mxu0 0
    %504 = vmatmul.mubr.bf16.gmra.mrb[0].mxu0 %v438
    %v505 = vpop.f32.mrb[0].mxu0
    %v506 = vadd.f32 %v404, %v505
    %v507 = vpop.f32.mrb[0].mxu0
    %v508 = vpop.f32.mrb[0].mxu0
    %v509 = vadd.f32 %v404, %v508
    %v510 = vpop.f32.mrb[0].mxu0
    %511 = vmatprep.mubr.bf16.mxu0 0
    %512 = vmatmul.mubr.bf16.gmra.mrb[0].mxu0 %v441
    %v513 = vpop.f32.mrb[0].mxu0
    %v514 = vadd.f32 %v404, %v513
    %v515 = vpop.f32.mrb[0].mxu0
    %v516 = vpop.f32.mrb[0].mxu0
    %v517 = vadd.f32 %v404, %v516
    %v518 = vpop.f32.mrb[0].mxu0
    %519 = vmatprep.mubr.bf16.mxu0 0
    %520 = vmatmul.mubr.bf16.gmra.mrb[0].mxu0 %v444
    %v521 = vpop.f32.mrb[0].mxu0
    %v522 = vadd.f32 %v404, %v521
    %v523 = vpop.f32.mrb[0].mxu0
    %v524 = vpop.f32.mrb[0].mxu0
    %v525 = vadd.f32 %v404, %v524
    %v526 = vpop.f32.mrb[0].mxu0
    %527 = vmatprep.mubr.bf16.mxu0 0
    %528 = vmatmul.mubr.bf16.gmra.mrb[0].mxu0 %v447
    %v529 = vpop.f32.mrb[0].mxu0
    %v530 = vadd.f32 %v404, %v529
    %v531 = vpop.f32.mrb[0].mxu0
    %v532 = vpop.f32.mrb[0].mxu0
    %v533 = vadd.f32 %v404, %v532
    %v534 = vpop.f32.mrb[0].mxu0
    %535 = vmatprep.mubr.bf16.mxu0 0
    %536 = vmatmul.mubr.bf16.gmra.mrb[0].mxu0 %v450
    %v537 = vpop.f32.mrb[0].mxu0
    %v538 = vadd.f32 %v404, %v537
    %v539 = vpop.f32.mrb[0].mxu0
    %v540 = vpop.f32.mrb[0].mxu0
    %v541 = vadd.f32 %v404, %v540
    %v542 = vpop.f32.mrb[0].mxu0
    %543 = vmatprep.mubr.bf16.mxu0 0
    %544 = vmatmul.mubr.bf16.gmra.mrb[0].mxu0 %v453
    %v545 = vpop.f32.mrb[0].mxu0
    %v546 = vadd.f32 %v404, %v545
    %v547 = vpop.f32.mrb[0].mxu0
    %v548 = vpop.f32.mrb[0].mxu0
    %v549 = vadd.f32 %v404, %v548
    %v550 = vpop.f32.mrb[0].mxu0
    %551 = vdwg.mxu0
    %v552 = vmax.f32 %v490, 0.0
    %v553 = vmax.f32 %v493, 0.0
    %v554 = vmax.f32 %v498, 0.0
    %v555 = vmax.f32 %v501, 0.0
    %v556 = vmax.f32 %v506, 0.0
    %v557 = vmax.f32 %v509, 0.0
    %v558 = vmax.f32 %v514, 0.0
    %v559 = vmax.f32 %v517, 0.0
    %v560 = vmax.f32 %v522, 0.0
    %v561 = vmax.f32 %v525, 0.0
    %v562 = vmax.f32 %v530, 0.0
    %v563 = vmax.f32 %v533, 0.0
    %v564 = vmax.f32 %v538, 0.0
    %v565 = vmax.f32 %v541, 0.0
    %v566 = vmax.f32 %v546, 0.0
    %v567 = vmax.f32 %v549, 0.0
    %v568 = vpack.c.bf16 %v553, %v552
    %v569 = vpack.c.bf16 %v555, %v554
    %v570 = vpack.c.bf16 %v557, %v556
    %v571 = vpack.c.bf16 %v559, %v558
    %v572 = vpack.c.bf16 %v561, %v560
    %v573 = vpack.c.bf16 %v563, %v562
    %v574 = vpack.c.bf16 %v565, %v564
    %v575 = vpack.c.bf16 %v567, %v566
    %v576 = vld [vmem:[%s5] sm:$0xf]
    %v577 = vld [vmem:[%s5 + $0x4] sm:$0xf]
    %v578 = vld [vmem:[%s5 + $0x8] sm:$0xf]
    %v579 = vld [vmem:[%s5 + $0xc] sm:$0xf]
    %v580 = vld [vmem:[%s5 + $0x10] sm:$0xf]
    %v581 = vld [vmem:[%s5 + $0x14] sm:$0xf]
    %v582 = vld [vmem:[%s5 + $0x18] sm:$0xf]
    %v583 = vld [vmem:[%s5 + $0x1c] sm:$0xf]
    %v592 = vunpack.c.l.b16 %v576
    %v593 = vunpack.c.l.b16 %v577
    %v594 = vunpack.c.l.b16 %v578
    %v595 = vunpack.c.l.b16 %v579
    %v596 = vunpack.c.l.b16 %v580
    %v597 = vunpack.c.l.b16 %v581
    %v598 = vunpack.c.l.b16 %v582
    %v599 = vunpack.c.l.b16 %v583
    %v600 = vpack.c.b16 %v593, %v592
    %v601 = vpack.c.b16 %v595, %v594
    %v602 = vpack.c.b16 %v597, %v596
    %v603 = vpack.c.b16 %v599, %v598
    %v609 = vsel %vm430, %v568, 0
    %v612 = vsel %vm430, %v569, 0
    %v615 = vsel %vm430, %v570, 0
    %v618 = vsel %vm430, %v571, 0
    %v621 = vsel %vm430, %v572, 0
    %v624 = vsel %vm430, %v573, 0
    %v627 = vsel %vm430, %v574, 0
    %v630 = vsel %vm430, %v575, 0
    %632 = vmatprep.subr.bf16.mxu0 0
    %633 = vmatpush1.bf16.msra.mxu0 %v600
    %634 = vmatprep.subr.bf16.mxu0 0
    %635 = vmatpush1.bf16.msra.mxu0 %v601
    %636 = vmatprep.subr.bf16.mxu0 0
    %637 = vmatpush1.bf16.msra.mxu0 %v602
    %638 = vmatprep.subr.bf16.mxu0 0
    %639 = vmatpush1.bf16.msra.mxu0 %v603
    %640 = vmatprep.subr.bf16.mxu0 0
    %641 = vmatpush1.bf16.msra.mxu0 0
    %642 = vmatprep.subr.bf16.mxu0 0
    %643 = vmatpush1.bf16.msra.mxu0 0
    %644 = vmatprep.subr.bf16.mxu0 0
    %645 = vmatpush1.bf16.msra.mxu0 0
    %646 = vmatprep.subr.bf16.mxu0 0
    %647 = vmatpush1.bf16.msra.mxu0 0
    %648 = vmatprep.subr.bf16.mxu0 0
    %649 = vmatpush1.bf16.msra.mxu0 0
    %650 = vmatprep.subr.bf16.mxu0 0
    %651 = vmatpush1.bf16.msra.mxu0 0
    %652 = vmatprep.subr.bf16.mxu0 0
    %653 = vmatpush1.bf16.msra.mxu0 0
    %654 = vmatprep.subr.bf16.mxu0 0
    %655 = vmatpush1.bf16.msra.mxu0 0
    %656 = vmatprep.subr.bf16.mxu0 0
    %657 = vmatpush1.bf16.msra.mxu0 0
    %658 = vmatprep.subr.bf16.mxu0 0
    %659 = vmatpush1.bf16.msra.mxu0 0
    %660 = vmatprep.subr.bf16.mxu0 0
    %661 = vmatpush1.bf16.msra.mxu0 0
    %662 = vmatprep.subr.bf16.mxu0 0
    %663 = vmatpush1.bf16.msra.mxu0 0
    %664 = vmatprep.mubr.bf16.mxu0 0
    %665 = vmatmul.mubr.bf16.gmra.mrb[0].mxu0 %v609
    %v666 = vpop.f32.mrb[0].mxu0
    %v667 = vadd.f32 0.0, %v666
    %v668 = vpop.f32.mrb[0].mxu0
    %v669 = vpop.f32.mrb[0].mxu0
    %v670 = vadd.f32 0.0, %v669
    %v671 = vpop.f32.mrb[0].mxu0
    %672 = vmatprep.mubr.bf16.mxu0 0
    %673 = vmatmul.mubr.bf16.gmra.mrb[0].mxu0 %v612
    %v674 = vpop.f32.mrb[0].mxu0
    %v675 = vadd.f32 0.0, %v674
    %v676 = vpop.f32.mrb[0].mxu0
    %v677 = vpop.f32.mrb[0].mxu0
    %v678 = vadd.f32 0.0, %v677
    %v679 = vpop.f32.mrb[0].mxu0
    %680 = vmatprep.mubr.bf16.mxu0 0
    %681 = vmatmul.mubr.bf16.gmra.mrb[0].mxu0 %v615
    %v682 = vpop.f32.mrb[0].mxu0
    %v683 = vadd.f32 0.0, %v682
    %v684 = vpop.f32.mrb[0].mxu0
    %v685 = vpop.f32.mrb[0].mxu0
    %v686 = vadd.f32 0.0, %v685
    %v687 = vpop.f32.mrb[0].mxu0
    %688 = vmatprep.mubr.bf16.mxu0 0
    %689 = vmatmul.mubr.bf16.gmra.mrb[0].mxu0 %v618
    %v690 = vpop.f32.mrb[0].mxu0
    %v691 = vadd.f32 0.0, %v690
    %v692 = vpop.f32.mrb[0].mxu0
    %v693 = vpop.f32.mrb[0].mxu0
    %v694 = vadd.f32 0.0, %v693
    %v695 = vpop.f32.mrb[0].mxu0
    %696 = vmatprep.mubr.bf16.mxu0 0
    %697 = vmatmul.mubr.bf16.gmra.mrb[0].mxu0 %v621
    %v698 = vpop.f32.mrb[0].mxu0
    %v699 = vadd.f32 0.0, %v698
    %v700 = vpop.f32.mrb[0].mxu0
    %v701 = vpop.f32.mrb[0].mxu0
    %v702 = vadd.f32 0.0, %v701
    %v703 = vpop.f32.mrb[0].mxu0
    %704 = vmatprep.mubr.bf16.mxu0 0
    %705 = vmatmul.mubr.bf16.gmra.mrb[0].mxu0 %v624
    %v706 = vpop.f32.mrb[0].mxu0
    %v707 = vadd.f32 0.0, %v706
    %v708 = vpop.f32.mrb[0].mxu0
    %v709 = vpop.f32.mrb[0].mxu0
    %v710 = vadd.f32 0.0, %v709
    %v711 = vpop.f32.mrb[0].mxu0
    %712 = vmatprep.mubr.bf16.mxu0 0
    %713 = vmatmul.mubr.bf16.gmra.mrb[0].mxu0 %v627
    %v714 = vpop.f32.mrb[0].mxu0
    %v715 = vadd.f32 0.0, %v714
    %v716 = vpop.f32.mrb[0].mxu0
    %v717 = vpop.f32.mrb[0].mxu0
    %v718 = vadd.f32 0.0, %v717
    %v719 = vpop.f32.mrb[0].mxu0
    %720 = vmatprep.mubr.bf16.mxu0 0
    %721 = vmatmul.mubr.bf16.gmra.mrb[0].mxu0 %v630
    %v722 = vpop.f32.mrb[0].mxu0
    %v723 = vadd.f32 0.0, %v722
    %v724 = vpop.f32.mrb[0].mxu0
    %v725 = vpop.f32.mrb[0].mxu0
    %v726 = vadd.f32 0.0, %v725
    %v727 = vpop.f32.mrb[0].mxu0
    %728 = vdwg.mxu0
    %v729 = vld [vmem:[%s6] sm:$0x1]
    %v731 = vlaneseq
    %v732 = vshrl.u32 %v731, 7
    %v733 = vsub.s32 0, %v732
    %v734 = vrot.slane %v729, %v733
    %v736 = vadd.f32 %v667, %v734
    %v737 = vadd.f32 %v670, %v734
    %v738 = vadd.f32 %v675, %v734
    %v739 = vadd.f32 %v678, %v734
    %v740 = vadd.f32 %v683, %v734
    %v741 = vadd.f32 %v686, %v734
    %v742 = vadd.f32 %v691, %v734
    %v743 = vadd.f32 %v694, %v734
    %v744 = vadd.f32 %v699, %v734
    %v745 = vadd.f32 %v702, %v734
    %v746 = vadd.f32 %v707, %v734
    %v747 = vadd.f32 %v710, %v734
    %v748 = vadd.f32 %v715, %v734
    %v749 = vadd.f32 %v718, %v734
    %v750 = vadd.f32 %v723, %v734
    %v751 = vadd.f32 %v726, %v734
    %vm752 = vcmask 23552
    %753 = vst.msk [vmem:[#allocation2] sm:$0xff] %vm752, %v736
    %754 = vst.msk [vmem:[#allocation2 + $0x8] sm:$0xff] %vm752, %v737
    %755 = vst.msk [vmem:[#allocation2 + $0x10] sm:$0xff] %vm752, %v738
    %756 = vst.msk [vmem:[#allocation2 + $0x18] sm:$0xff] %vm752, %v739
    %757 = vst.msk [vmem:[#allocation2 + $0x20] sm:$0xff] %vm752, %v740
    %758 = vst.msk [vmem:[#allocation2 + $0x28] sm:$0xff] %vm752, %v741
    %759 = vst.msk [vmem:[#allocation2 + $0x30] sm:$0xff] %vm752, %v742
    %760 = vst.msk [vmem:[#allocation2 + $0x38] sm:$0xff] %vm752, %v743
    %761 = vst.msk [vmem:[#allocation2 + $0x40] sm:$0xff] %vm752, %v744
    %762 = vst.msk [vmem:[#allocation2 + $0x48] sm:$0xff] %vm752, %v745
    %763 = vst.msk [vmem:[#allocation2 + $0x50] sm:$0xff] %vm752, %v746
    %764 = vst.msk [vmem:[#allocation2 + $0x58] sm:$0xff] %vm752, %v747
    %765 = vst.msk [vmem:[#allocation2 + $0x60] sm:$0xff] %vm752, %v748
    %766 = vst.msk [vmem:[#allocation2 + $0x68] sm:$0xff] %vm752, %v749
    %767 = vst.msk [vmem:[#allocation2 + $0x70] sm:$0xff] %vm752, %v750
    %768 = vst.msk [vmem:[#allocation2 + $0x78] sm:$0xff] %vm752, %v751
    // Predicated region
    $region30: #{inverse_kinematics_forward.1} parent=1 // pred_check
      _
    $region31: #{inverse_kinematics_forward.1} parent=1 // pred_check_branch
      %770 = sbr.rel (0) target = $region33
    $region32: #{inverse_kinematics_forward.1} parent=1 // pred_region
      // Predicated region
      $region34: #{inverse_kinematics_forward.1} parent=32 // pred_check
        _
      $region35: #{inverse_kinematics_forward.1} parent=32 // pred_check_branch
        %772 = sbr.rel (0) target = $region37
      $region36: #{inverse_kinematics_forward.1} parent=32 // pred_region
        // Predicated region
        $region38: #{inverse_kinematics_forward.1} parent=36 // pred_check
          _
        $region39: #{inverse_kinematics_forward.1} parent=36 // pred_check_branch
          %774 = sbr.rel (0) target = $region41
        $region40: #{inverse_kinematics_forward.1} parent=36 // pred_region
          // Predicated region
          $region53: #{inverse_kinematics_forward.1} parent=40 // pred_check
            _
          $region54: #{inverse_kinematics_forward.1} parent=40 // pred_check_branch
            %789 = sbr.rel (0) target = $region56
          $region55: #{inverse_kinematics_forward.1} parent=40 // pred_region
            loop: start=0, step=1, limit=1
            $region57: #{inverse_kinematics_forward.1} parent=55 // loop_pre_header
              _
            $region58: #{inverse_kinematics_forward.1} parent=55 // loop_header
              %s791 = sphi 0, %s795
              %p792 = scmp.ge.s32.totalorder %s791, 1
              %s796 = sphi [#allocation2], [#allocation2]
              %s797 = sphi %s7, %s7
            $region59: #{inverse_kinematics_forward.1} parent=55 // loop_header_branch
              %794 = sbr.rel (%p792) target = $region63
            $region60: #{inverse_kinematics_forward.1} parent=55 // loop_body
              %v798 = vld [vmem:[%s796] sm:$0xff]
              %799 = vst [vmem:[%s797] sm:$0xff] %v798
            $region61: #{inverse_kinematics_forward.1} parent=55 // loop_footer
              %s795 = sadd.s32 1, %s791
            $region62: #{inverse_kinematics_forward.1} parent=55 // loop_footer_branch
              %790 = sbr.rel target = $region58
            $region63: #{inverse_kinematics_forward.1} parent=55 // loop_exit
              _
          $region56: #{inverse_kinematics_forward.1} parent=40 // pred_fallthru
            _
          // Predicated region
          $region64: #{inverse_kinematics_forward.1} parent=40 // pred_check
            _
          $region65: #{inverse_kinematics_forward.1} parent=40 // pred_check_branch
            %801 = sbr.rel target = $region67
          $region66: #{inverse_kinematics_forward.1} parent=40 // pred_region
            _
          $region67: #{inverse_kinematics_forward.1} parent=40 // pred_fallthru
            _
        $region41: #{inverse_kinematics_forward.1} parent=36 // pred_fallthru
          _
        // Predicated region
        $region42: #{inverse_kinematics_forward.1} parent=36 // pred_check
          _
        $region43: #{inverse_kinematics_forward.1} parent=36 // pred_check_branch
          %776 = sbr.rel target = $region45
        $region44: #{inverse_kinematics_forward.1} parent=36 // pred_region
          loop: start=0, step=1, limit=1
          $region46: #{inverse_kinematics_forward.1} parent=44 // loop_pre_header
            _
          $region47: #{inverse_kinematics_forward.1} parent=44 // loop_header
            %s779 = sphi 0, %s783
            %p780 = scmp.ge.s32.totalorder %s779, 1
            %s784 = sphi [#allocation2], [#allocation2]
            %s785 = sphi %s7, %s7
          $region48: #{inverse_kinematics_forward.1} parent=44 // loop_header_branch
            %782 = sbr.rel (%p780) target = $region52
          $region49: #{inverse_kinematics_forward.1} parent=44 // loop_body
            %v786 = vld [vmem:[%s784] sm:$0xff]
            %787 = vst [vmem:[%s785] sm:$0xff] %v786
          $region50: #{inverse_kinematics_forward.1} parent=44 // loop_footer
            %s783 = sadd.s32 1, %s779
          $region51: #{inverse_kinematics_forward.1} parent=44 // loop_footer_branch
            %778 = sbr.rel target = $region47
          $region52: #{inverse_kinematics_forward.1} parent=44 // loop_exit
            _
        $region45: #{inverse_kinematics_forward.1} parent=36 // pred_fallthru
          _
      $region37: #{inverse_kinematics_forward.1} parent=32 // pred_fallthru
        _
      %802 = vnop
    $region33: #{inverse_kinematics_forward.1} parent=1 // pred_fallthru
      _
    // Predicated region
    $region68: #{inverse_kinematics_forward.1} parent=1 // pred_check
      _
    $region69: #{inverse_kinematics_forward.1} parent=1 // pred_check_branch
      %804 = sbr.rel (0) target = $region71
    $region70: #{inverse_kinematics_forward.1} parent=1 // pred_region
      _
    $region71: #{inverse_kinematics_forward.1} parent=1 // pred_fallthru
      _

</llo_original>
